<compile_context>
chip_gen: v6e
topology: v6e:2x2x1
jax: 0.10.0
libtpu: 0.0.40
codegen_flags: <defaults>
</compile_context>

<pallas_src>
import functools
import math

import jax
import jax.numpy as jnp
from jax.experimental import pallas as pl
from jax.experimental.pallas import tpu as pltpu


# --------------------------------------------------------------------------- #
# Kernel
# --------------------------------------------------------------------------- #
def _cond_scale_shift_kernel(t_ref, w_ref, b_ref, x_ref, o_ref, *, k, compute_dtype):
    # t_ref: (1, T)       time embedding for this batch element
    # w_ref: (2, T, dim)  [0] -> scale weights, [1] -> shift weights (in x out)
    # b_ref: (2, 1, dim)  matching biases
    # x_ref: (r_tile, C)  lane-dense view, C = k * dim (k seq positions / row)
    # o_ref: (r_tile, C)
    #
    # SiLU + the M=1 Linear are recomputed per tile: the kernel is HBM-bound,
    # so this is free filler and it keeps both grid axes "parallel" (megacore).
    tt = t_ref[...].astype(jnp.float32)                       # (1, T)
    tt = tt * jax.nn.sigmoid(tt)                              # SiLU (EUP)
    scale = jnp.dot(tt, w_ref[0], preferred_element_type=jnp.float32)
    scale = scale + b_ref[0].astype(jnp.float32) + 1.0        # (scale + 1)
    shift = jnp.dot(tt, w_ref[1], preferred_element_type=jnp.float32)
    shift = shift + b_ref[1].astype(jnp.float32)
    if k > 1:  # replicate per folded sequence position -> lane-dense (1, C) row
        scale = jnp.tile(scale, (1, k))
        shift = jnp.tile(shift, (1, k))
    scale = scale.astype(compute_dtype)
    shift = shift.astype(compute_dtype)

    # Pure streaming FMA: out = x * (scale + 1) + shift.
    x = x_ref[...].astype(compute_dtype)
    o_ref[...] = (x * scale + shift).astype(o_ref.dtype)


# --------------------------------------------------------------------------- #
# Wrapper
# --------------------------------------------------------------------------- #
def _device_kind():
    try:
        return jax.devices()[0].device_kind.lower()
    except Exception:
        return ""


def _default_row_tile_bytes():
    kind = _device_kind()
    # v5e/v6e: 128 MiB VMEM -> larger streaming tiles; v7x: 64 MiB -> ~2 MiB cap.
    if "v5" in kind or "v6" in kind:
        return 4 * 1024 * 1024
    return 2 * 1024 * 1024


def _pick_compute_dtype(x_dtype):
    # bf16 streaming FMA on chips with a bf16 VPU (v6e/v7x); f32 elsewhere.
    if jnp.dtype(x_dtype) == jnp.dtype(jnp.bfloat16) and "v5" not in _device_kind():
        return jnp.bfloat16
    return jnp.float32


def prepare_scale_shift_params(weight, bias):
    """One-time re-layout of nn.Linear(time_emb_dim, 2*dim) parameters.

    weight: (2*dim, time_emb_dim)  -- PyTorch (out, in) layout
    bias  : (2*dim,)
    Returns (w3, b3) with w3: (2, T, dim) [0]=scale/[1]=shift in (in x out)
    layout and b3: (2, 1, dim).  Do this once at model init, not per forward.
    """
    two_dim, T = weight.shape
    dim = two_dim // 2
    w3 = jnp.transpose(jnp.reshape(weight, (2, dim, T)), (0, 2, 1))  # (2, T, dim)
    b3 = jnp.reshape(bias, (2, 1, dim))
    return w3, b3


def conditional_scale_shift(x, t, w3, b3, *, row_tile_bytes=None):
    """
    x       : (B, L, dim)
    t       : (B, 1, time_emb_dim)
    w3, b3  : output of prepare_scale_shift_params(weight, bias)
    returns (B, L, dim)
    """
    B, L, dim = x.shape
    T = t.shape[-1]
    assert t.shape == (B, 1, T)
    assert w3.shape == (2, T, dim)
    assert b3.shape == (2, 1, dim)

    cdiv = lambda a, b: -(-a // b)

    # --- lane-dense folding of the (L, dim) plane: (L, dim) -> (R, C) --------
    if dim % 128 == 0:
        k = 1
        L_pad = L
    else:
        k = math.lcm(dim, 128) // dim
        L_pad = cdiv(L, k) * k          # pad a few rows instead of masked stores
    if L_pad != L:
        x = jnp.pad(x, ((0, 0), (0, L_pad - L), (0, 0)))
    R, C = L_pad // k, k * dim
    x2 = jnp.reshape(x, (B, R, C))      # free reshape of contiguous memory

    # --- row tile: dtype-aware granule, biggest tile under budget, even split -
    itemsize = jnp.dtype(x.dtype).itemsize
    g = {4: 8, 2: 16, 1: 32}.get(itemsize, 8)      # sublane packing granule
    if row_tile_bytes is None:
        row_tile_bytes = _default_row_tile_bytes()
    # NOTE: floor of one granule of rows can exceed row_tile_bytes for huge C.
    max_rows = max(g, (row_tile_bytes // (C * itemsize)) // g * g)
    if R <= max_rows:
        r_tile = R
        n_row_tiles = 1
    else:
        n_tiles = cdiv(R, max_rows)
        r_tile = min(cdiv(cdiv(R, n_tiles), g) * g, R)   # even-ish, <= max_rows
        n_row_tiles = cdiv(R, r_tile)

    compute_dtype = _pick_compute_dtype(x.dtype)
    kernel = functools.partial(_cond_scale_shift_kernel, k=k,
                               compute_dtype=compute_dtype)

    # --- accounted VMEM budget ----------------------------------------------
    tile_bytes = r_tile * C * itemsize
    const_bytes = ((2 * T * dim + 2 * dim) * w3.dtype.itemsize
                   + T * t.dtype.itemsize)
    vmem_limit = int(min(max(4 * tile_bytes + const_bytes + (4 << 20), 16 << 20),
                         48 << 20))

    def _call(single_buffer_consts):
        const_mode = ({"pipeline_mode": pl.Buffered(1)}
                      if single_buffer_consts else {})
        return pl.pallas_call(
            kernel,
            out_shape=jax.ShapeDtypeStruct((B, R, C), x.dtype),
            grid_spec=pltpu.PrefetchScalarGridSpec(
                num_scalar_prefetch=0,
                grid=(B, n_row_tiles),
                in_specs=[
                    pl.BlockSpec((pl.Squeezed(), 1, T),
                                 lambda b, l: (b, 0, 0), **const_mode),        # t
                    pl.BlockSpec((2, T, dim),
                                 lambda b, l: (0, 0, 0), **const_mode),        # weights
                    pl.BlockSpec((2, 1, dim),
                                 lambda b, l: (0, 0, 0), **const_mode),        # biases
                    pl.BlockSpec((pl.Squeezed(), r_tile, C),
                                 lambda b, l: (b, l, 0)),                      # x tile
                ],
                out_specs=pl.BlockSpec((pl.Squeezed(), r_tile, C),
                                       lambda b, l: (b, l, 0)),
            ),
            compiler_params=pltpu.CompilerParams(
                # No cross-iteration state -> both axes parallel (v7x megacore).
                dimension_semantics=("parallel", "parallel"),
                vmem_limit_bytes=vmem_limit,
            ),
        )(t, w3, b3, x2)

    try:
        out2 = _call(True)
    except Exception:
        # Fallback if this JAX build rejects Buffered(1); same semantics.
        out2 = _call(False)

    out = jnp.reshape(out2, (B, L_pad, dim))
    if L_pad != L:
        out = out[:, :L, :]
    return out


def conditional_scale_shift_from_linear(x, t, weight, bias, **kw):
    """Convenience one-shot entry point (re-lays-out params every call)."""
    w3, b3 = prepare_scale_shift_params(weight, bias)
    return conditional_scale_shift(x, t, w3, b3, **kw)


# --------------------------------------------------------------------------- #
# Pure-JAX reference mirroring the PyTorch module exactly
# --------------------------------------------------------------------------- #
def _reference(x, t, weight, bias):
    t_silu = t * jax.nn.sigmoid(t)
    ss = jnp.einsum("bot,dt->bod", t_silu, weight,
                    precision=jax.lax.Precision.HIGHEST) + bias   # (B, 1, 2*dim)
    dim = x.shape[-1]
    scale, shift = ss[..., :dim], ss[..., dim:]
    return x * (scale + 1.0) + shift


if __name__ == "__main__":
    configs = [
        # (B, L, dim, time_emb_dim, dtype, row_tile_bytes_override)
        (2, 16, 16, 32, jnp.float32, None),    # k=8 lane-dense fold, single tile
        (2, 40, 128, 64, jnp.float32, 8192),   # k=1, multiple row tiles + ragged tail
        (1, 6, 24, 32, jnp.float32, None),     # dim%128 path with L padded (k=16)
        (2, 160, 32, 32, jnp.bfloat16, 4096),  # bf16 streaming, multi-tile, ragged tail
    ]
    key = jax.random.PRNGKey(0)
    for (B, L, dim, T, dtype, rtb) in configs:
        key, kx, kt, kw, kb = jax.random.split(key, 5)
        x = jax.random.normal(kx, (B, L, dim), dtype=jnp.float32).astype(dtype)
        t = jax.random.normal(kt, (B, 1, T), dtype=jnp.float32).astype(dtype)
        # Deterministic nn.Linear-style init: U(-1/sqrt(fan_in), 1/sqrt(fan_in))
        bound = 1.0 / math.sqrt(T)
        weight = jax.random.uniform(kw, (2 * dim, T), minval=-bound, maxval=bound,
                                    dtype=jnp.float32)
        bias = jax.random.uniform(kb, (2 * dim,), minval=-bound, maxval=bound,
                                  dtype=jnp.float32)

        w3, b3 = prepare_scale_shift_params(weight, bias)   # one-time re-layout
        kwargs = {} if rtb is None else {"row_tile_bytes": rtb}
        out = jax.block_until_ready(conditional_scale_shift(x, t, w3, b3, **kwargs))

        ref = _reference(x.astype(jnp.float32), t.astype(jnp.float32), weight, bias)
        if dtype == jnp.float32:
            atol, rtol = 2e-3, 2e-3
        else:  # bf16 streaming path rounds x*(scale+1)+shift in bf16
            atol, rtol = 6e-2, 3e-2
        assert jnp.allclose(out.astype(jnp.float32), ref, atol=atol, rtol=rtol), \
            f"mismatch vs reference for config {(B, L, dim, T, dtype)}"

    print("KERNEL_OK")
</pallas_src>

<mosaic_0001>
module attributes {stable_mosaic.version = 11 : i64} {
  func.func @_cond_scale_shift_kernel(%arg0: i32, %arg1: i32, %arg2: memref<1x1x32xf32, #tpu.memory_space<vmem>>, %arg3: memref<2x32x16xf32, #tpu.memory_space<vmem>>, %arg4: memref<2x1x16xf32, #tpu.memory_space<vmem>>, %arg5: memref<1x2x128xf32, #tpu.memory_space<vmem>>, %arg6: memref<1x2x128xf32, #tpu.memory_space<vmem>>) attributes {dimension_semantics = [#tpu.dimension_semantics<parallel>, #tpu.dimension_semantics<parallel>], iteration_bounds = array<i64: 2, 1>, scalar_prefetch = 0 : i64, scratch_operands = 0 : i64, tpu.core_type = #tpu.core_type<tc>, window_params = [{pipeline_mode = #tpu.pipeline_mode<synchronous>, transform_indices = @transform_0, window_bounds = array<i64: 1, 1, 32>}, {pipeline_mode = #tpu.pipeline_mode<synchronous>, transform_indices = @transform_1, window_bounds = array<i64: 2, 32, 16>}, {pipeline_mode = #tpu.pipeline_mode<synchronous>, transform_indices = @transform_2, window_bounds = array<i64: 2, 1, 16>}, {transform_indices = @transform_3, window_bounds = array<i64: 1, 2, 128>}, {transform_indices = @transform_4, window_bounds = array<i64: 1, 2, 128>}]} {
    %c0 = arith.constant 0 : index
    %c0_0 = arith.constant 0 : index
    %c0_1 = arith.constant 0 : index
    %0 = vector.load %arg2[%c0, %c0_0, %c0_1] : memref<1x1x32xf32, #tpu.memory_space<vmem>>, vector<1x1x32xf32>
    %1 = vector.shape_cast %0 : vector<1x1x32xf32> to vector<1x32xf32>
    %2 = arith.negf %1 : vector<1x32xf32>
    %3 = math.exp %2 : vector<1x32xf32>
    %cst = arith.constant 1.000000e+00 : f32
    %4 = vector.broadcast %cst : f32 to vector<1x32xf32>
    %5 = arith.addf %4, %3 : vector<1x32xf32>
    %6 = arith.divf %4, %5 : vector<1x32xf32>
    %7 = arith.mulf %1, %6 : vector<1x32xf32>
    %c0_2 = arith.constant 0 : index
    %c0_3 = arith.constant 0 : index
    %c0_4 = arith.constant 0 : index
    %8 = vector.load %arg3[%c0_2, %c0_3, %c0_4] : memref<2x32x16xf32, #tpu.memory_space<vmem>>, vector<1x32x16xf32>
    %9 = vector.shape_cast %8 : vector<1x32x16xf32> to vector<32x16xf32>
    %cst_5 = arith.constant dense<0.000000e+00> : vector<1x16xf32>
    %10 = tpu.matmul %7, %9, %cst_5 {dimension_numbers = #tpu.dot_dimension_numbers<[1], [0], [0], [1], [0, 0, 1, 1], [], []>} : vector<1x32xf32>, vector<32x16xf32>, vector<1x16xf32> -> vector<1x16xf32>
    %c0_6 = arith.constant 0 : index
    %c0_7 = arith.constant 0 : index
    %c0_8 = arith.constant 0 : index
    %11 = vector.load %arg4[%c0_6, %c0_7, %c0_8] : memref<2x1x16xf32, #tpu.memory_space<vmem>>, vector<1x1x16xf32>
    %12 = vector.shape_cast %11 : vector<1x1x16xf32> to vector<1x16xf32>
    %13 = arith.addf %10, %12 : vector<1x16xf32>
    %cst_9 = arith.constant 1.000000e+00 : f32
    %14 = vector.broadcast %cst_9 : f32 to vector<1x16xf32>
    %15 = arith.addf %13, %14 : vector<1x16xf32>
    %c1 = arith.constant 1 : index
    %c0_10 = arith.constant 0 : index
    %c0_11 = arith.constant 0 : index
    %16 = vector.load %arg3[%c1, %c0_10, %c0_11] : memref<2x32x16xf32, #tpu.memory_space<vmem>>, vector<1x32x16xf32>
    %17 = vector.shape_cast %16 : vector<1x32x16xf32> to vector<32x16xf32>
    %cst_12 = arith.constant dense<0.000000e+00> : vector<1x16xf32>
    %18 = tpu.matmul %7, %17, %cst_12 {dimension_numbers = #tpu.dot_dimension_numbers<[1], [0], [0], [1], [0, 0, 1, 1], [], []>} : vector<1x32xf32>, vector<32x16xf32>, vector<1x16xf32> -> vector<1x16xf32>
    %c1_13 = arith.constant 1 : index
    %c0_14 = arith.constant 0 : index
    %c0_15 = arith.constant 0 : index
    %19 = vector.load %arg4[%c1_13, %c0_14, %c0_15] : memref<2x1x16xf32, #tpu.memory_space<vmem>>, vector<1x1x16xf32>
    %20 = vector.shape_cast %19 : vector<1x1x16xf32> to vector<1x16xf32>
    %21 = arith.addf %18, %20 : vector<1x16xf32>
    %22 = tpu.concatenate %15, %15, %15, %15, %15, %15, %15, %15 in 1 : vector<1x16xf32>, vector<1x16xf32>, vector<1x16xf32>, vector<1x16xf32>, vector<1x16xf32>, vector<1x16xf32>, vector<1x16xf32>, vector<1x16xf32> -> vector<1x128xf32>
    %23 = tpu.concatenate %21, %21, %21, %21, %21, %21, %21, %21 in 1 : vector<1x16xf32>, vector<1x16xf32>, vector<1x16xf32>, vector<1x16xf32>, vector<1x16xf32>, vector<1x16xf32>, vector<1x16xf32>, vector<1x16xf32> -> vector<1x128xf32>
    %c0_16 = arith.constant 0 : index
    %c0_17 = arith.constant 0 : index
    %c0_18 = arith.constant 0 : index
    %24 = vector.load %arg5[%c0_16, %c0_17, %c0_18] : memref<1x2x128xf32, #tpu.memory_space<vmem>>, vector<1x2x128xf32>
    %25 = vector.shape_cast %24 : vector<1x2x128xf32> to vector<2x128xf32>
    %26 = vector.broadcast %22 : vector<1x128xf32> to vector<2x128xf32>
    %27 = arith.mulf %25, %26 : vector<2x128xf32>
    %28 = vector.broadcast %23 : vector<1x128xf32> to vector<2x128xf32>
    %29 = arith.addf %27, %28 : vector<2x128xf32>
    %c0_19 = arith.constant 0 : index
    %c0_20 = arith.constant 0 : index
    %c0_21 = arith.constant 0 : index
    %30 = vector.load %arg6[%c0_19, %c0_20, %c0_21] : memref<1x2x128xf32, #tpu.memory_space<vmem>>, vector<1x2x128xf32>
    %31 = vector.shape_cast %30 : vector<1x2x128xf32> to vector<2x128xf32>
    %32 = vector.shape_cast %29 : vector<2x128xf32> to vector<1x2x128xf32>
    tpu.vector_store %arg6[%c0_19, %c0_20, %c0_21], %32 {strides = array<i32>} : memref<1x2x128xf32, #tpu.memory_space<vmem>>, vector<1x2x128xf32>,
    return
  }
  func.func @transform_0(%arg0: i32, %arg1: i32) -> (i32, i32, i32) {
    %c0_i32 = arith.constant 0 : i32
    %c0_i32_0 = arith.constant 0 : i32
    %c0_i32_1 = arith.constant 0 : i32
    return %arg0, %c0_i32, %c0_i32_0 : i32, i32, i32
  }
  func.func @transform_1(%arg0: i32, %arg1: i32) -> (i32, i32, i32) {
    %c0_i32 = arith.constant 0 : i32
    %c0_i32_0 = arith.constant 0 : i32
    %c0_i32_1 = arith.constant 0 : i32
    %c0_i32_2 = arith.constant 0 : i32
    return %c0_i32, %c0_i32_0, %c0_i32_1 : i32, i32, i32
  }
  func.func @transform_2(%arg0: i32, %arg1: i32) -> (i32, i32, i32) {
    %c0_i32 = arith.constant 0 : i32
    %c0_i32_0 = arith.constant 0 : i32
    %c0_i32_1 = arith.constant 0 : i32
    %c0_i32_2 = arith.constant 0 : i32
    return %c0_i32, %c0_i32_0, %c0_i32_1 : i32, i32, i32
  }
  func.func @transform_3(%arg0: i32, %arg1: i32) -> (i32, i32, i32) {
    %c0_i32 = arith.constant 0 : i32
    %c0_i32_0 = arith.constant 0 : i32
    return %arg0, %arg1, %c0_i32 : i32, i32, i32
  }
  func.func @transform_4(%arg0: i32, %arg1: i32) -> (i32, i32, i32) {
    %c0_i32 = arith.constant 0 : i32
    %c0_i32_0 = arith.constant 0 : i32
    return %arg0, %arg1, %c0_i32 : i32, i32, i32
  }
}

module attributes {stable_mosaic.version = 11 : i64} {
  func.func @_cond_scale_shift_kernel(%arg0: i32, %arg1: i32, %arg2: memref<1x1x32xf32, #tpu.memory_space<vmem>>, %arg3: memref<2x32x16xf32, #tpu.memory_space<vmem>>, %arg4: memref<2x1x16xf32, #tpu.memory_space<vmem>>, %arg5: memref<1x2x128xf32, #tpu.memory_space<vmem>>, %arg6: memref<1x2x128xf32, #tpu.memory_space<vmem>>) attributes {dimension_semantics = [#tpu.dimension_semantics<parallel>, #tpu.dimension_semantics<parallel>], iteration_bounds = array<i64: 2, 1>, scalar_prefetch = 0 : i64, scratch_operands = 0 : i64, tpu.core_type = #tpu.core_type<tc>, window_params = [{transform_indices = @transform_0, window_bounds = array<i64: 1, 1, 32>}, {pipeline_mode = #tpu.pipeline_mode<synchronous>, transform_indices = @transform_1, window_bounds = array<i64: 2, 32, 16>}, {pipeline_mode = #tpu.pipeline_mode<synchronous>, transform_indices = @transform_2, window_bounds = array<i64: 2, 1, 16>}, {transform_indices = @transform_3, window_bounds = array<i64: 1, 2, 128>}, {transform_indices = @transform_4, window_bounds = array<i64: 1, 2, 128>}]} {
    %c0 = arith.constant 0 : index
    %c0_0 = arith.constant 0 : index
    %c0_1 = arith.constant 0 : index
    %0 = vector.load %arg2[%c0, %c0_0, %c0_1] : memref<1x1x32xf32, #tpu.memory_space<vmem>>, vector<1x1x32xf32>
    %1 = vector.shape_cast %0 : vector<1x1x32xf32> to vector<1x32xf32>
    %2 = arith.negf %1 : vector<1x32xf32>
    %3 = math.exp %2 : vector<1x32xf32>
    %cst = arith.constant 1.000000e+00 : f32
    %4 = vector.broadcast %cst : f32 to vector<1x32xf32>
    %5 = arith.addf %4, %3 : vector<1x32xf32>
    %6 = arith.divf %4, %5 : vector<1x32xf32>
    %7 = arith.mulf %1, %6 : vector<1x32xf32>
    %c0_2 = arith.constant 0 : index
    %c0_3 = arith.constant 0 : index
    %c0_4 = arith.constant 0 : index
    %8 = vector.load %arg3[%c0_2, %c0_3, %c0_4] : memref<2x32x16xf32, #tpu.memory_space<vmem>>, vector<1x32x16xf32>
    %9 = vector.shape_cast %8 : vector<1x32x16xf32> to vector<32x16xf32>
    %cst_5 = arith.constant dense<0.000000e+00> : vector<1x16xf32>
    %10 = tpu.matmul %7, %9, %cst_5 {dimension_numbers = #tpu.dot_dimension_numbers<[1], [0], [0], [1], [0, 0, 1, 1], [], []>} : vector<1x32xf32>, vector<32x16xf32>, vector<1x16xf32> -> vector<1x16xf32>
    %c0_6 = arith.constant 0 : index
    %c0_7 = arith.constant 0 : index
    %c0_8 = arith.constant 0 : index
    %11 = vector.load %arg4[%c0_6, %c0_7, %c0_8] : memref<2x1x16xf32, #tpu.memory_space<vmem>>, vector<1x1x16xf32>
    %12 = vector.shape_cast %11 : vector<1x1x16xf32> to vector<1x16xf32>
    %13 = arith.addf %10, %12 : vector<1x16xf32>
    %cst_9 = arith.constant 1.000000e+00 : f32
    %14 = vector.broadcast %cst_9 : f32 to vector<1x16xf32>
    %15 = arith.addf %13, %14 : vector<1x16xf32>
    %c1 = arith.constant 1 : index
    %c0_10 = arith.constant 0 : index
    %c0_11 = arith.constant 0 : index
    %16 = vector.load %arg3[%c1, %c0_10, %c0_11] : memref<2x32x16xf32, #tpu.memory_space<vmem>>, vector<1x32x16xf32>
    %17 = vector.shape_cast %16 : vector<1x32x16xf32> to vector<32x16xf32>
    %cst_12 = arith.constant dense<0.000000e+00> : vector<1x16xf32>
    %18 = tpu.matmul %7, %17, %cst_12 {dimension_numbers = #tpu.dot_dimension_numbers<[1], [0], [0], [1], [0, 0, 1, 1], [], []>} : vector<1x32xf32>, vector<32x16xf32>, vector<1x16xf32> -> vector<1x16xf32>
    %c1_13 = arith.constant 1 : index
    %c0_14 = arith.constant 0 : index
    %c0_15 = arith.constant 0 : index
    %19 = vector.load %arg4[%c1_13, %c0_14, %c0_15] : memref<2x1x16xf32, #tpu.memory_space<vmem>>, vector<1x1x16xf32>
    %20 = vector.shape_cast %19 : vector<1x1x16xf32> to vector<1x16xf32>
    %21 = arith.addf %18, %20 : vector<1x16xf32>
    %22 = tpu.concatenate %15, %15, %15, %15, %15, %15, %15, %15 in 1 : vector<1x16xf32>, vector<1x16xf32>, vector<1x16xf32>, vector<1x16xf32>, vector<1x16xf32>, vector<1x16xf32>, vector<1x16xf32>, vector<1x16xf32> -> vector<1x128xf32>
    %23 = tpu.concatenate %21, %21, %21, %21, %21, %21, %21, %21 in 1 : vector<1x16xf32>, vector<1x16xf32>, vector<1x16xf32>, vector<1x16xf32>, vector<1x16xf32>, vector<1x16xf32>, vector<1x16xf32>, vector<1x16xf32> -> vector<1x128xf32>
    %c0_16 = arith.constant 0 : index
    %c0_17 = arith.constant 0 : index
    %c0_18 = arith.constant 0 : index
    %24 = vector.load %arg5[%c0_16, %c0_17, %c0_18] : memref<1x2x128xf32, #tpu.memory_space<vmem>>, vector<1x2x128xf32>
    %25 = vector.shape_cast %24 : vector<1x2x128xf32> to vector<2x128xf32>
    %26 = vector.broadcast %22 : vector<1x128xf32> to vector<2x128xf32>
    %27 = arith.mulf %25, %26 : vector<2x128xf32>
    %28 = vector.broadcast %23 : vector<1x128xf32> to vector<2x128xf32>
    %29 = arith.addf %27, %28 : vector<2x128xf32>
    %c0_19 = arith.constant 0 : index
    %c0_20 = arith.constant 0 : index
    %c0_21 = arith.constant 0 : index
    %30 = vector.load %arg6[%c0_19, %c0_20, %c0_21] : memref<1x2x128xf32, #tpu.memory_space<vmem>>, vector<1x2x128xf32>
    %31 = vector.shape_cast %30 : vector<1x2x128xf32> to vector<2x128xf32>
    %32 = vector.shape_cast %29 : vector<2x128xf32> to vector<1x2x128xf32>
    tpu.vector_store %arg6[%c0_19, %c0_20, %c0_21], %32 {strides = array<i32>} : memref<1x2x128xf32, #tpu.memory_space<vmem>>, vector<1x2x128xf32>,
    return
  }
  func.func @transform_0(%arg0: i32, %arg1: i32) -> (i32, i32, i32) {
    %c0_i32 = arith.constant 0 : i32
    %c0_i32_0 = arith.constant 0 : i32
    %c0_i32_1 = arith.constant 0 : i32
    return %arg0, %c0_i32, %c0_i32_0 : i32, i32, i32
  }
  func.func @transform_1(%arg0: i32, %arg1: i32) -> (i32, i32, i32) {
    %c0_i32 = arith.constant 0 : i32
    %c0_i32_0 = arith.constant 0 : i32
    %c0_i32_1 = arith.constant 0 : i32
    %c0_i32_2 = arith.constant 0 : i32
    return %c0_i32, %c0_i32_0, %c0_i32_1 : i32, i32, i32
  }
  func.func @transform_2(%arg0: i32, %arg1: i32) -> (i32, i32, i32) {
    %c0_i32 = arith.constant 0 : i32
    %c0_i32_0 = arith.constant 0 : i32
    %c0_i32_1 = arith.constant 0 : i32
    %c0_i32_2 = arith.constant 0 : i32
    return %c0_i32, %c0_i32_0, %c0_i32_1 : i32, i32, i32
  }
  func.func @transform_3(%arg0: i32, %arg1: i32) -> (i32, i32, i32) {
    %c0_i32 = arith.constant 0 : i32
    %c0_i32_0 = arith.constant 0 : i32
    return %arg0, %arg1, %c0_i32 : i32, i32, i32
  }
  func.func @transform_4(%arg0: i32, %arg1: i32) -> (i32, i32, i32) {
    %c0_i32 = arith.constant 0 : i32
    %c0_i32_0 = arith.constant 0 : i32
    return %arg0, %arg1, %c0_i32 : i32, i32, i32
  }
}

</mosaic_0001>

<llo_original>
// kernel: tpu_custom_call.1
$region0: #{tpu_custom_call.1}
  #allocation0 [shape = 'u32[]', space=smem, size = 0x4, offset = 0x4, fixed_abs, tag = 'smem constant byte address 0x4 - core index']
  #allocation1 [shape = 'u32[144,128]{1,0:T(1,128)}', space=vmem, size = 0x12000, scoped, tag = 'internal scratch']
  %s0 = inlined_call_operand.vmem [shape: f32[2,1,32], index: 0, kind: input, shape index: {}]
  %s1 = inlined_call_operand.vmem [shape: f32[2,32,16], index: 1, kind: input, shape index: {}]
  %s2 = inlined_call_operand.vmem [shape: f32[2,1,16], index: 2, kind: input, shape index: {}]
  %s3 = inlined_call_operand.vmem [shape: f32[2,2,128], index: 3, kind: input, shape index: {}]
  %s4 = inlined_call_operand.hbm [shape: f32[2,2,128], index: 4, kind: output, shape index: {}]
  %s5 = sld [smem:[#allocation0]]
  $region49: #{tpu_custom_call.1} parent=0
    _
  %s7 = ssub.s32 1, %s5
  %s8 = scalar_select 0, %s7, %s5
  $region1: #{tpu_custom_call.1} parent=0
    #allocation2 [shape = 'u8[2048]{0}', space=vmem, size = 0x800, scoped, tag = 'output window, operand 0']
    #allocation3 [shape = 's32[2]{0}', space=sflag, size = 0x8, scoped, tag = 'scoped memory for tpu_custom_call.1']
    %9 = vsyncpa [#allocation3], 0
    %s10 = scalar_lea.sflag [#allocation3], 1
    %11 = vsyncpa %s10, 0
    loop: start=0, step=1, limit=4
    $region2: #{tpu_custom_call.1} parent=1 // loop_pre_header
      _
    $region3: #{tpu_custom_call.1} parent=1 // loop_header
      %s13 = sphi 0, %s17
      %p14 = scmp.ge.s32.totalorder %s13, 4
      %s20 = sphi 0, %s32
      %s21 = sphi 0, %s28
      %s22 = sphi 0, %s20
      %s23 = sphi 0, %s21
      %s24 = sphi 0, %s22
      %s25 = sphi 0, %s23
      %s35 = sphi 0, %s37
      %s38 = sphi 0, %s35
      %s39 = sphi 0, %s38
      %s55 = sphi 0, %s39
      %s59 = sphi 0, %s59
      %s61 = sphi 0, %s59
      %s62 = sphi 0, %s61
      %s76 = sphi 0, %s62
      %s80 = sphi 0, %s80
      %s82 = sphi 0, %s80
      %s83 = sphi 0, %s82
      %s97 = sphi 0, %s83
      %s105 = sphi 0, %s107
      %s108 = sphi 0, %s105
      %s109 = sphi 0, %s108
      %s125 = sphi 0, %s109
      %s133 = sphi 0, %s135
      %s136 = sphi 0, %s133
      %s137 = sphi 0, %s136
      %s153 = sphi 0, %s137
    $region4: #{tpu_custom_call.1} parent=1 // loop_header_branch
      %16 = sbr.rel (%p14) target = $region8
    $region5: #{tpu_custom_call.1} parent=1 // loop_body
      %s18 = ssub.s32 %s13, 1
      %s19 = ssub.s32 %s13, 2
      %s26 = sadd.s32 1, %s21
      %p27 = scmp.ge.s32.totalorder %s26, 1
      %s28 = scalar_select %p27, 0, %s26
      %s29 = sadd.s32 1, %s20
      %s30 = scalar_select %p27, %s29, %s20
      %p31 = scmp.ge.s32.totalorder %s30, 2
      %s32 = scalar_select %p31, 0, %s30
      %s33 = ssub.s32 %s20, %s32
      %p34 = scmp.eq.s32.totalorder %s33, 0
      %s36 = sadd.s32 %s35, 1
      %s37 = scalar_select %p34, %s35, %s36
      %p40 = pneg %p34
      %p41 = scmp.eq.s32.totalorder %s13, 1
      %p42 = por %p40, %p41
      %p43 = scmp.ne.s32.totalorder %s35, %s38
      %p44 = scmp.eq.s32.totalorder %s13, 0
      %p45 = por %p43, %p44
      %p46 = scmp.ne.s32.totalorder %s35, %s38
      %p47 = scmp.eq.s32.totalorder %s18, 1
      %p48 = por %p46, %p47
      %p49 = scmp.ne.s32.totalorder %s38, %s39
      %p50 = scmp.eq.s32.totalorder %s18, 0
      %p51 = por %p49, %p50
      %p52 = scmp.ne.s32.totalorder %s38, %s39
      %p53 = scmp.eq.s32.totalorder %s19, 1
      %p54 = por %p52, %p53
      %p56 = scmp.ne.s32.totalorder %s39, %s55
      %p57 = scmp.eq.s32.totalorder %s19, 0
      %p58 = por %p56, %p57
      %s60 = sadd.s32 %s59, 1
      %p63 = scmp.eq.s32.totalorder %s13, 1
      %p64 = scmp.ne.s32.totalorder %s59, %s61
      %p65 = scmp.eq.s32.totalorder %s13, 0
      %p66 = por %p64, %p65
      %p67 = scmp.ne.s32.totalorder %s59, %s61
      %p68 = scmp.eq.s32.totalorder %s18, 1
      %p69 = por %p67, %p68
      %p70 = scmp.ne.s32.totalorder %s61, %s62
      %p71 = scmp.eq.s32.totalorder %s18, 0
      %p72 = por %p70, %p71
      %p73 = scmp.ne.s32.totalorder %s61, %s62
      %p74 = scmp.eq.s32.totalorder %s19, 1
      %p75 = por %p73, %p74
      %p77 = scmp.ne.s32.totalorder %s62, %s76
      %p78 = scmp.eq.s32.totalorder %s19, 0
      %p79 = por %p77, %p78
      %s81 = sadd.s32 %s80, 1
      %p84 = scmp.eq.s32.totalorder %s13, 1
      %p85 = scmp.ne.s32.totalorder %s80, %s82
      %p86 = scmp.eq.s32.totalorder %s13, 0
      %p87 = por %p85, %p86
      %p88 = scmp.ne.s32.totalorder %s80, %s82
      %p89 = scmp.eq.s32.totalorder %s18, 1
      %p90 = por %p88, %p89
      %p91 = scmp.ne.s32.totalorder %s82, %s83
      %p92 = scmp.eq.s32.totalorder %s18, 0
      %p93 = por %p91, %p92
      %p94 = scmp.ne.s32.totalorder %s82, %s83
      %p95 = scmp.eq.s32.totalorder %s19, 1
      %p96 = por %p94, %p95
      %p98 = scmp.ne.s32.totalorder %s83, %s97
      %p99 = scmp.eq.s32.totalorder %s19, 0
      %p100 = por %p98, %p99
      %s101 = ssub.s32 %s20, %s32
      %s102 = ssub.s32 %s21, %s28
      %s103 = sor.u32 %s101, %s102
      %p104 = scmp.eq.s32.totalorder %s103, 0
      %s106 = sadd.s32 %s105, 1
      %s107 = scalar_select %p104, %s105, %s106
      %p110 = pneg %p104
      %p111 = scmp.eq.s32.totalorder %s13, 1
      %p112 = por %p110, %p111
      %p113 = scmp.ne.s32.totalorder %s105, %s108
      %p114 = scmp.eq.s32.totalorder %s13, 0
      %p115 = por %p113, %p114
      %p116 = scmp.ne.s32.totalorder %s105, %s108
      %p117 = scmp.eq.s32.totalorder %s18, 1
      %p118 = por %p116, %p117
      %p119 = scmp.ne.s32.totalorder %s108, %s109
      %p120 = scmp.eq.s32.totalorder %s18, 0
      %p121 = por %p119, %p120
      %p122 = scmp.ne.s32.totalorder %s108, %s109
      %p123 = scmp.eq.s32.totalorder %s19, 1
      %p124 = por %p122, %p123
      %p126 = scmp.ne.s32.totalorder %s109, %s125
      %p127 = scmp.eq.s32.totalorder %s19, 0
      %p128 = por %p126, %p127
      %s129 = ssub.s32 %s20, %s32
      %s130 = ssub.s32 %s21, %s28
      %s131 = sor.u32 %s129, %s130
      %p132 = scmp.eq.s32.totalorder %s131, 0
      %s134 = sadd.s32 %s133, 1
      %s135 = scalar_select %p132, %s133, %s134
      %p138 = pneg %p132
      %p139 = scmp.eq.s32.totalorder %s13, 1
      %p140 = por %p138, %p139
      %p141 = scmp.ne.s32.totalorder %s133, %s136
      %p142 = scmp.eq.s32.totalorder %s13, 0
      %p143 = por %p141, %p142
      %p144 = scmp.ne.s32.totalorder %s133, %s136
      %p145 = scmp.eq.s32.totalorder %s18, 1
      %p146 = por %p144, %p145
      %p147 = scmp.ne.s32.totalorder %s136, %s137
      %p148 = scmp.eq.s32.totalorder %s18, 0
      %p149 = por %p147, %p148
      %p150 = scmp.ne.s32.totalorder %s136, %s137
      %p151 = scmp.eq.s32.totalorder %s19, 1
      %p152 = por %p150, %p151
      %p154 = scmp.ne.s32.totalorder %s137, %s153
      %p155 = scmp.eq.s32.totalorder %s19, 0
      %p156 = por %p154, %p155
      %p157 = scmp.le.s32.totalorder 1, %s13
      %p158 = scmp.lt.s32.totalorder %s13, 3
      %p159 = pnand %p157, %p158
      %p160 = pneg %p159
      // Predicated region
      $region9: #{tpu_custom_call.1} parent=5 // pred_check
        _
      $region10: #{tpu_custom_call.1} parent=5 // pred_check_branch
        %162 = sbr.rel (%p159) target = $region12
      $region11: #{tpu_custom_call.1} parent=5 // pred_region
        %s163 = ssub.s32 %s13, 1
        // Predicated region
        $region13: #{tpu_custom_call.1} parent=11 // pred_check
          %p164 = pneg %p51
        $region14: #{tpu_custom_call.1} parent=11 // pred_check_branch
          %166 = sbr.rel (%p164) target = $region16
        $region15: #{tpu_custom_call.1} parent=11 // pred_region
          %p167 = scmp.lt.s32.totalorder %s22, 1
          %s168 = scalar_select %p167, %s22, 1
          %s169 = scalar_lea.vmem %s0, %s168
        $region16: #{tpu_custom_call.1} parent=11 // pred_fallthru
          _
        // Predicated region
        $region17: #{tpu_custom_call.1} parent=11 // pred_check
          %p170 = pneg %p72
        $region18: #{tpu_custom_call.1} parent=11 // pred_check_branch
          %172 = sbr.rel (%p170) target = $region20
        $region19: #{tpu_custom_call.1} parent=11 // pred_region
          _
        $region20: #{tpu_custom_call.1} parent=11 // pred_fallthru
          _
        // Predicated region
        $region21: #{tpu_custom_call.1} parent=11 // pred_check
          %p173 = pneg %p93
        $region22: #{tpu_custom_call.1} parent=11 // pred_check_branch
          %175 = sbr.rel (%p173) target = $region24
        $region23: #{tpu_custom_call.1} parent=11 // pred_region
          _
        $region24: #{tpu_custom_call.1} parent=11 // pred_fallthru
          _
      $region12: #{tpu_custom_call.1} parent=5 // pred_fallthru
        _
      %p176 = scmp.lt.s32.totalorder %s13, 2
      // Predicated region
      $region25: #{tpu_custom_call.1} parent=5 // pred_check
        %p177 = pneg %p176
      $region26: #{tpu_custom_call.1} parent=5 // pred_check_branch
        %179 = sbr.rel (%p177) target = $region28
      $region27: #{tpu_custom_call.1} parent=5 // pred_region
        // Predicated region
        $region29: #{tpu_custom_call.1} parent=27 // pred_check
          %p180 = pneg %p115
        $region30: #{tpu_custom_call.1} parent=27 // pred_check_branch
          %182 = sbr.rel (%p180) target = $region32
        $region31: #{tpu_custom_call.1} parent=27 // pred_region
          %p183 = scmp.lt.s32.totalorder %s20, 1
          %s184 = scalar_select %p183, %s20, 1
          %p185 = scmp.lt.s32.totalorder %s21, 0
          %s186 = scalar_select %p185, %s21, 0
          %s187 = sadd.s32 %s186, %s184
          %s188 = smul.addr %s187, 2
          %s189 = scalar_lea.vmem %s3, %s188
        $region32: #{tpu_custom_call.1} parent=27 // pred_fallthru
          _
      $region28: #{tpu_custom_call.1} parent=5 // pred_fallthru
        _
      %p190 = scmp.le.s32.totalorder 1, %s13
      %p191 = scmp.lt.s32.totalorder %s13, 3
      %p192 = pnand %p190, %p191
      %p193 = pneg %p192
      // Predicated region
      $region33: #{tpu_custom_call.1} parent=5 // pred_check
        _
      $region34: #{tpu_custom_call.1} parent=5 // pred_check_branch
        %195 = sbr.rel (%p192) target = $region36
      $region35: #{tpu_custom_call.1} parent=5 // pred_region
        %s196 = ssub.s32 %s13, 1
        %p197 = scmp.lt.s32.totalorder %s22, 1
        %s198 = scalar_select %p197, %s22, 1
        %s199 = scalar_lea.vmem %s0, %s198
        %p200 = pneg %p51
        %p201 = pneg %p48
        %p202 = pneg %p72
        %p203 = pneg %p69
        %p204 = pneg %p93
        %p205 = pneg %p90
        %p206 = scmp.lt.s32.totalorder %s22, 1
        %s207 = scalar_select %p206, %s22, 1
        %p208 = scmp.lt.s32.totalorder %s23, 0
        %s209 = scalar_select %p208, %s23, 0
        %s210 = sadd.s32 %s209, %s207
        %s211 = smul.addr %s210, 2
        %s212 = scalar_lea.vmem %s3, %s211
        %p213 = pneg %p121
        %p214 = pneg %p118
        %p215 = pneg %p149
        %p216 = pneg %p146
        %s217 = sand.u32 %s136, 1
        %s218 = scalar_lea.sflag [#allocation3], %s217
        %s219 = sand.u32 %s136, 1
        %s220 = smul.addr %s219, 2
        %s221 = scalar_lea.vmem [#allocation2], %s220
        %p222 = scmp.lt.s32.totalorder %s22, 1
        %s223 = scalar_select %p222, %s22, 1
        %s224 = scalar_lea.vmem %s0, %s223
        %p225 = scmp.lt.s32.totalorder %s22, 1
        %s226 = scalar_select %p225, %s22, 1
        %p227 = scmp.lt.s32.totalorder %s23, 0
        %s228 = scalar_select %p227, %s23, 0
        %s229 = sadd.s32 %s228, %s226
        %s230 = smul.addr %s229, 2
        %s231 = scalar_lea.vmem %s3, %s230
        %v232 = vld [vmem:[%s224] sm:$0x1]
        %v233 = vxor.u32 %v232, 2147483648
        %v234 = vmul.f32 %v233, 1.442695
        %v235 = vpow.pop %v234
        %v236 = vadd.f32 %v235, 1.0
        %v237 = vrcp.pop %v236
        %v238 = vmul.f32 1.0, %v237
        %v239 = vmul.f32 %v232, %v238
        %v240 = vld [vmem:[%s1] sm:$0xff]
        %v241 = vld [vmem:[%s1 + $0x8] sm:$0xff]
        %v242 = vld [vmem:[%s1 + $0x10] sm:$0xff]
        %v243 = vld [vmem:[%s1 + $0x18] sm:$0xff]
        %v244 = vld [vmem:[%s2] sm:$0x1]
        %vm245 = vcmask 261120
        %v247 = vsel %vm245, %v239, 0
        %249 = vmatprep.subr.mxu0 0.0
        %250 = vmatpush1.msra.mxu0 0.0
        %251 = vmatprep.subr.mxu0 0.0
        %252 = vmatpush1.msra.mxu0 0.0
        %253 = vmatprep.subr.mxu0 0.0
        %254 = vmatpush1.msra.mxu0 0.0
        %255 = vmatprep.subr.mxu0 0.0
        %256 = vmatpush1.msra.mxu0 0.0
        %257 = vmatprep.subr.mxu0 0.0
        %258 = vmatpush1.msra.mxu0 0.0
        %259 = vmatprep.subr.mxu0 0.0
        %260 = vmatpush1.msra.mxu0 0.0
        %261 = vmatprep.subr.mxu0 0.0
        %262 = vmatpush1.msra.mxu0 0.0
        %263 = vmatprep.subr.mxu0 0.0
        %264 = vmatpush1.msra.mxu0 0.0
        %265 = vmatprep.subr.mxu0 0.0
        %266 = vmatpush1.msra.mxu0 0.0
        %267 = vmatprep.subr.mxu0 0.0
        %268 = vmatpush1.msra.mxu0 0.0
        %269 = vmatprep.subr.mxu0 0.0
        %270 = vmatpush1.msra.mxu0 0.0
        %271 = vmatprep.subr.mxu0 0.0
        %272 = vmatpush1.msra.mxu0 0.0
        %273 = vmatprep.subr.mxu0 0.0
        %274 = vmatpush1.msra.mxu0 %v243
        %275 = vmatprep.subr.mxu0 0.0
        %276 = vmatpush1.msra.mxu0 %v242
        %277 = vmatprep.subr.mxu0 0.0
        %278 = vmatpush1.msra.mxu0 %v241
        %279 = vmatprep.subr.mxu0 0.0
        %280 = vmatpush1.msra.mxu0 %v240
        %281 = vmatprep.subr.mxu0 0.0
        %282 = vmatpush2.msra.mxu0 0.0
        %283 = vmatprep.subr.mxu0 0.0
        %284 = vmatpush2.msra.mxu0 0.0
        %285 = vmatprep.subr.mxu0 0.0
        %286 = vmatpush2.msra.mxu0 0.0
        %287 = vmatprep.subr.mxu0 0.0
        %288 = vmatpush2.msra.mxu0 0.0
        %289 = vmatprep.subr.mxu0 0.0
        %290 = vmatpush2.msra.mxu0 0.0
        %291 = vmatprep.subr.mxu0 0.0
        %292 = vmatpush2.msra.mxu0 0.0
        %293 = vmatprep.subr.mxu0 0.0
        %294 = vmatpush2.msra.mxu0 0.0
        %295 = vmatprep.subr.mxu0 0.0
        %296 = vmatpush2.msra.mxu0 0.0
        %297 = vmatprep.subr.mxu0 0.0
        %298 = vmatpush2.msra.mxu0 0.0
        %299 = vmatprep.subr.mxu0 0.0
        %300 = vmatpush2.msra.mxu0 0.0
        %301 = vmatprep.subr.mxu0 0.0
        %302 = vmatpush2.msra.mxu0 0.0
        %303 = vmatprep.subr.mxu0 0.0
        %304 = vmatpush2.msra.mxu0 0.0
        %305 = vmatprep.subr.mxu0 0.0
        %306 = vmatpush2.msra.mxu0 0.0
        %307 = vmatprep.subr.mxu0 0.0
        %308 = vmatpush2.msra.mxu0 0.0
        %309 = vmatprep.subr.mxu0 0.0
        %310 = vmatpush2.msra.mxu0 0.0
        %311 = vmatprep.subr.mxu0 0.0
        %312 = vmatpush2.msra.mxu0 0.0
        %313 = vmatprep.mubr.f32.mxu0 0.0
        %314 = vmatmul.mubr.f32.gmra.mxu0 %v247
        %v315 = vpop.f32.mrf.mxu0
        %v316 = vadd.f32 %v244, %v315
        %v317 = vpop.f32.mrf.mxu0
        %318 = vdwg.mxu0
        %v319 = vadd.f32 %v316, 1.0
        %s320 = scalar_lea.vmem %s1, 32
        %v321 = vld [vmem:[%s320] sm:$0xff]
        %v322 = vld [vmem:[%s320 + $0x8] sm:$0xff]
        %v323 = vld [vmem:[%s320 + $0x10] sm:$0xff]
        %v324 = vld [vmem:[%s320 + $0x18] sm:$0xff]
        %s325 = scalar_lea.vmem %s2, 1
        %v326 = vld [vmem:[%s325] sm:$0x1]
        %327 = vmatprep.subr.mxu0 0.0
        %328 = vmatpush1.msra.mxu0 0.0
        %329 = vmatprep.subr.mxu0 0.0
        %330 = vmatpush1.msra.mxu0 0.0
        %331 = vmatprep.subr.mxu0 0.0
        %332 = vmatpush1.msra.mxu0 0.0
        %333 = vmatprep.subr.mxu0 0.0
        %334 = vmatpush1.msra.mxu0 0.0
        %335 = vmatprep.subr.mxu0 0.0
        %336 = vmatpush1.msra.mxu0 0.0
        %337 = vmatprep.subr.mxu0 0.0
        %338 = vmatpush1.msra.mxu0 0.0
        %339 = vmatprep.subr.mxu0 0.0
        %340 = vmatpush1.msra.mxu0 0.0
        %341 = vmatprep.subr.mxu0 0.0
        %342 = vmatpush1.msra.mxu0 0.0
        %343 = vmatprep.subr.mxu0 0.0
        %344 = vmatpush1.msra.mxu0 0.0
        %345 = vmatprep.subr.mxu0 0.0
        %346 = vmatpush1.msra.mxu0 0.0
        %347 = vmatprep.subr.mxu0 0.0
        %348 = vmatpush1.msra.mxu0 0.0
        %349 = vmatprep.subr.mxu0 0.0
        %350 = vmatpush1.msra.mxu0 0.0
        %351 = vmatprep.subr.mxu0 0.0
        %352 = vmatpush1.msra.mxu0 %v324
        %353 = vmatprep.subr.mxu0 0.0
        %354 = vmatpush1.msra.mxu0 %v323
        %355 = vmatprep.subr.mxu0 0.0
        %356 = vmatpush1.msra.mxu0 %v322
        %357 = vmatprep.subr.mxu0 0.0
        %358 = vmatpush1.msra.mxu0 %v321
        %359 = vmatprep.subr.mxu0 0.0
        %360 = vmatpush2.msra.mxu0 0.0
        %361 = vmatprep.subr.mxu0 0.0
        %362 = vmatpush2.msra.mxu0 0.0
        %363 = vmatprep.subr.mxu0 0.0
        %364 = vmatpush2.msra.mxu0 0.0
        %365 = vmatprep.subr.mxu0 0.0
        %366 = vmatpush2.msra.mxu0 0.0
        %367 = vmatprep.subr.mxu0 0.0
        %368 = vmatpush2.msra.mxu0 0.0
        %369 = vmatprep.subr.mxu0 0.0
        %370 = vmatpush2.msra.mxu0 0.0
        %371 = vmatprep.subr.mxu0 0.0
        %372 = vmatpush2.msra.mxu0 0.0
        %373 = vmatprep.subr.mxu0 0.0
        %374 = vmatpush2.msra.mxu0 0.0
        %375 = vmatprep.subr.mxu0 0.0
        %376 = vmatpush2.msra.mxu0 0.0
        %377 = vmatprep.subr.mxu0 0.0
        %378 = vmatpush2.msra.mxu0 0.0
        %379 = vmatprep.subr.mxu0 0.0
        %380 = vmatpush2.msra.mxu0 0.0
        %381 = vmatprep.subr.mxu0 0.0
        %382 = vmatpush2.msra.mxu0 0.0
        %383 = vmatprep.subr.mxu0 0.0
        %384 = vmatpush2.msra.mxu0 0.0
        %385 = vmatprep.subr.mxu0 0.0
        %386 = vmatpush2.msra.mxu0 0.0
        %387 = vmatprep.subr.mxu0 0.0
        %388 = vmatpush2.msra.mxu0 0.0
        %389 = vmatprep.subr.mxu0 0.0
        %390 = vmatpush2.msra.mxu0 0.0
        %391 = vmatprep.mubr.f32.mxu0 0.0
        %392 = vmatmul.mubr.f32.gmra.mxu0 %v247
        %v393 = vpop.f32.mrf.mxu0
        %v394 = vadd.f32 %v326, %v393
        %v395 = vpop.f32.mrf.mxu0
        %396 = vdwg.mxu0
        %398 = vrot.lane.b32.xlu0 %v319, 16
        %v399 = vpop.permute.xlu0 %398
        %401 = vrot.lane.b32.xlu0 %v319, 32
        %v402 = vpop.permute.xlu0 %401
        %404 = vrot.lane.b32.xlu0 %v319, 48
        %v405 = vpop.permute.xlu0 %404
        %407 = vrot.lane.b32.xlu0 %v319, 64
        %v408 = vpop.permute.xlu0 %407
        %410 = vrot.lane.b32.xlu0 %v319, 80
        %v411 = vpop.permute.xlu0 %410
        %413 = vrot.lane.b32.xlu0 %v319, 96
        %v414 = vpop.permute.xlu0 %413
        %416 = vrot.lane.b32.xlu0 %v319, 112
        %v417 = vpop.permute.xlu0 %416
        %vm419 = vcmask 130048
        %v420 = vsel %vm419, %v319, %v399
        %v421 = vsel %vm245, %v420, %v402
        %vm422 = vcmask 392192
        %v423 = vsel %vm422, %v421, %v405
        %vm424 = vcmask 523264
        %v425 = vsel %vm424, %v423, %v408
        %vm426 = vcmask 654336
        %v427 = vsel %vm426, %v425, %v411
        %vm428 = vcmask 785408
        %v429 = vsel %vm428, %v427, %v414
        %vm430 = vcmask 916480
        %v431 = vsel %vm430, %v429, %v417
        %433 = vrot.lane.b32.xlu0 %v394, 16
        %v434 = vpop.permute.xlu0 %433
        %436 = vrot.lane.b32.xlu0 %v394, 32
        %v437 = vpop.permute.xlu0 %436
        %439 = vrot.lane.b32.xlu0 %v394, 48
        %v440 = vpop.permute.xlu0 %439
        %442 = vrot.lane.b32.xlu0 %v394, 64
        %v443 = vpop.permute.xlu0 %442
        %445 = vrot.lane.b32.xlu0 %v394, 80
        %v446 = vpop.permute.xlu0 %445
        %448 = vrot.lane.b32.xlu0 %v394, 96
        %v449 = vpop.permute.xlu0 %448
        %451 = vrot.lane.b32.xlu0 %v394, 112
        %v452 = vpop.permute.xlu0 %451
        %v454 = vsel %vm419, %v394, %v434
        %v455 = vsel %vm245, %v454, %v437
        %v456 = vsel %vm422, %v455, %v440
        %v457 = vsel %vm424, %v456, %v443
        %v458 = vsel %vm426, %v457, %v446
        %v459 = vsel %vm428, %v458, %v449
        %v460 = vsel %vm430, %v459, %v452
        %v461 = vld [vmem:[%s231] sm:$0x3]
        %v462 = vlaneseq
        %v463 = vshrl.u32 %v462, 7
        %v464 = vsub.s32 0, %v463
        %v465 = vrot.slane %v431, %v464
        %v466 = vmul.f32 %v461, %v465
        %v467 = vlaneseq
        %v468 = vshrl.u32 %v467, 7
        %v469 = vsub.s32 0, %v468
        %v470 = vrot.slane %v460, %v469
        %v471 = vadd.f32 %v466, %v470
        %472 = vst [vmem:[%s221] sm:$0x3] %v471
        %s473 = sand.u32 %s136, 1
        %s474 = scalar_lea.sflag [#allocation3], %s473
        %s475 = sand.u32 %s136, 1
        %s476 = smul.addr %s475, 2
        %s477 = scalar_lea.vmem [#allocation2], %s476
        // Predicated region
        $region37: #{tpu_custom_call.1} parent=35 // pred_check
          %p478 = pneg %p146
        $region38: #{tpu_custom_call.1} parent=35 // pred_check_branch
          %480 = sbr.rel (%p478) target = $region40
        $region39: #{tpu_custom_call.1} parent=35 // pred_region
          %s482 = ssub.s32 32, 32
          %483 = vsyncadd %s474, %s482
          %s484 = sadd.s32 %s23, %s22
          %s485 = smul.addr %s484, 32
          %s486 = scalar_lea.hbm %s4, %s485
          %s488 = sshll.u32 %s477, 4
          %s489 = int_to_ptr.vmem [resolvable:$true] %s488
          %491 = dma.vmem_to_hbm [thread:$0]  %s489, 32, %s486, %s474
        $region40: #{tpu_custom_call.1} parent=35 // pred_fallthru
          _
      $region36: #{tpu_custom_call.1} parent=5 // pred_fallthru
        _
      %p492 = scmp.le.s32.totalorder 2, %s13
      // Predicated region
      $region41: #{tpu_custom_call.1} parent=5 // pred_check
        %p493 = pneg %p492
      $region42: #{tpu_custom_call.1} parent=5 // pred_check_branch
        %495 = sbr.rel (%p493) target = $region44
      $region43: #{tpu_custom_call.1} parent=5 // pred_region
        %s496 = ssub.s32 %s13, 2
        // Predicated region
        $region45: #{tpu_custom_call.1} parent=43 // pred_check
          %p497 = pneg %p152
        $region46: #{tpu_custom_call.1} parent=43 // pred_check_branch
          %499 = sbr.rel (%p497) target = $region48
        $region47: #{tpu_custom_call.1} parent=43 // pred_region
          %s500 = sand.u32 %s137, 1
          %s501 = scalar_lea.sflag [#allocation3], %s500
          %s502 = sand.u32 %s137, 1
          %s503 = smul.addr %s502, 2
          %s504 = scalar_lea.vmem [#allocation2], %s503
          %505 = dma.done %s501, 32
        $region48: #{tpu_custom_call.1} parent=43 // pred_fallthru
          _
      $region44: #{tpu_custom_call.1} parent=5 // pred_fallthru
        _
    $region6: #{tpu_custom_call.1} parent=1 // loop_footer
      %s17 = sadd.s32 1, %s13
    $region7: #{tpu_custom_call.1} parent=1 // loop_footer_branch
      %12 = sbr.rel target = $region3
    $region8: #{tpu_custom_call.1} parent=1 // loop_exit
      _
    %506 = vsyncpa [#allocation3], 1
    %s507 = scalar_lea.sflag [#allocation3], 1
    %508 = vsyncpa %s507, 1

// kernel: tpu_custom_call.1
$region0: #{tpu_custom_call.1}
  #allocation0 [shape = 'u32[]', space=smem, size = 0x4, offset = 0x4, fixed_abs, tag = 'smem constant byte address 0x4 - core index']
  #allocation1 [shape = 'u32[144,128]{1,0:T(1,128)}', space=vmem, size = 0x12000, scoped, tag = 'internal scratch']
  %s0 = inlined_call_operand.vmem [shape: f32[2,1,32], index: 0, kind: input, shape index: {}]
  %s1 = inlined_call_operand.vmem [shape: f32[2,32,16], index: 1, kind: input, shape index: {}]
  %s2 = inlined_call_operand.vmem [shape: f32[2,1,16], index: 2, kind: input, shape index: {}]
  %s3 = inlined_call_operand.vmem [shape: f32[2,2,128], index: 3, kind: input, shape index: {}]
  %s4 = inlined_call_operand.hbm [shape: f32[2,2,128], index: 4, kind: output, shape index: {}]
  %s5 = sld [smem:[#allocation0]]
  $region49: #{tpu_custom_call.1} parent=0
    _
  %s7 = ssub.s32 1, %s5
  %s8 = scalar_select 0, %s7, %s5
  $region1: #{tpu_custom_call.1} parent=0
    #allocation2 [shape = 'u8[2048]{0}', space=vmem, size = 0x800, scoped, tag = 'output window, operand 0']
    #allocation3 [shape = 's32[2]{0}', space=sflag, size = 0x8, scoped, tag = 'scoped memory for tpu_custom_call.1']
    %9 = vsyncpa [#allocation3], 0
    %s10 = scalar_lea.sflag [#allocation3], 1
    %11 = vsyncpa %s10, 0
    loop: start=0, step=1, limit=4
    $region2: #{tpu_custom_call.1} parent=1 // loop_pre_header
      _
    $region3: #{tpu_custom_call.1} parent=1 // loop_header
      %s13 = sphi 0, %s17
      %p14 = scmp.ge.s32.totalorder %s13, 4
      %s20 = sphi 0, %s32
      %s21 = sphi 0, %s28
      %s22 = sphi 0, %s20
      %s23 = sphi 0, %s21
      %s24 = sphi 0, %s22
      %s25 = sphi 0, %s23
      %s35 = sphi 0, %s37
      %s38 = sphi 0, %s35
      %s39 = sphi 0, %s38
      %s55 = sphi 0, %s39
      %s59 = sphi 0, %s59
      %s61 = sphi 0, %s59
      %s62 = sphi 0, %s61
      %s76 = sphi 0, %s62
      %s80 = sphi 0, %s80
      %s82 = sphi 0, %s80
      %s83 = sphi 0, %s82
      %s97 = sphi 0, %s83
      %s105 = sphi 0, %s107
      %s108 = sphi 0, %s105
      %s109 = sphi 0, %s108
      %s125 = sphi 0, %s109
      %s133 = sphi 0, %s135
      %s136 = sphi 0, %s133
      %s137 = sphi 0, %s136
      %s153 = sphi 0, %s137
    $region4: #{tpu_custom_call.1} parent=1 // loop_header_branch
      %16 = sbr.rel (%p14) target = $region8
    $region5: #{tpu_custom_call.1} parent=1 // loop_body
      %s18 = ssub.s32 %s13, 1
      %s19 = ssub.s32 %s13, 2
      %s26 = sadd.s32 1, %s21
      %p27 = scmp.ge.s32.totalorder %s26, 1
      %s28 = scalar_select %p27, 0, %s26
      %s29 = sadd.s32 1, %s20
      %s30 = scalar_select %p27, %s29, %s20
      %p31 = scmp.ge.s32.totalorder %s30, 2
      %s32 = scalar_select %p31, 0, %s30
      %s33 = ssub.s32 %s20, %s32
      %p34 = scmp.eq.s32.totalorder %s33, 0
      %s36 = sadd.s32 %s35, 1
      %s37 = scalar_select %p34, %s35, %s36
      %p40 = pneg %p34
      %p41 = scmp.eq.s32.totalorder %s13, 1
      %p42 = por %p40, %p41
      %p43 = scmp.ne.s32.totalorder %s35, %s38
      %p44 = scmp.eq.s32.totalorder %s13, 0
      %p45 = por %p43, %p44
      %p46 = scmp.ne.s32.totalorder %s35, %s38
      %p47 = scmp.eq.s32.totalorder %s18, 1
      %p48 = por %p46, %p47
      %p49 = scmp.ne.s32.totalorder %s38, %s39
      %p50 = scmp.eq.s32.totalorder %s18, 0
      %p51 = por %p49, %p50
      %p52 = scmp.ne.s32.totalorder %s38, %s39
      %p53 = scmp.eq.s32.totalorder %s19, 1
      %p54 = por %p52, %p53
      %p56 = scmp.ne.s32.totalorder %s39, %s55
      %p57 = scmp.eq.s32.totalorder %s19, 0
      %p58 = por %p56, %p57
      %s60 = sadd.s32 %s59, 1
      %p63 = scmp.eq.s32.totalorder %s13, 1
      %p64 = scmp.ne.s32.totalorder %s59, %s61
      %p65 = scmp.eq.s32.totalorder %s13, 0
      %p66 = por %p64, %p65
      %p67 = scmp.ne.s32.totalorder %s59, %s61
      %p68 = scmp.eq.s32.totalorder %s18, 1
      %p69 = por %p67, %p68
      %p70 = scmp.ne.s32.totalorder %s61, %s62
      %p71 = scmp.eq.s32.totalorder %s18, 0
      %p72 = por %p70, %p71
      %p73 = scmp.ne.s32.totalorder %s61, %s62
      %p74 = scmp.eq.s32.totalorder %s19, 1
      %p75 = por %p73, %p74
      %p77 = scmp.ne.s32.totalorder %s62, %s76
      %p78 = scmp.eq.s32.totalorder %s19, 0
      %p79 = por %p77, %p78
      %s81 = sadd.s32 %s80, 1
      %p84 = scmp.eq.s32.totalorder %s13, 1
      %p85 = scmp.ne.s32.totalorder %s80, %s82
      %p86 = scmp.eq.s32.totalorder %s13, 0
      %p87 = por %p85, %p86
      %p88 = scmp.ne.s32.totalorder %s80, %s82
      %p89 = scmp.eq.s32.totalorder %s18, 1
      %p90 = por %p88, %p89
      %p91 = scmp.ne.s32.totalorder %s82, %s83
      %p92 = scmp.eq.s32.totalorder %s18, 0
      %p93 = por %p91, %p92
      %p94 = scmp.ne.s32.totalorder %s82, %s83
      %p95 = scmp.eq.s32.totalorder %s19, 1
      %p96 = por %p94, %p95
      %p98 = scmp.ne.s32.totalorder %s83, %s97
      %p99 = scmp.eq.s32.totalorder %s19, 0
      %p100 = por %p98, %p99
      %s101 = ssub.s32 %s20, %s32
      %s102 = ssub.s32 %s21, %s28
      %s103 = sor.u32 %s101, %s102
      %p104 = scmp.eq.s32.totalorder %s103, 0
      %s106 = sadd.s32 %s105, 1
      %s107 = scalar_select %p104, %s105, %s106
      %p110 = pneg %p104
      %p111 = scmp.eq.s32.totalorder %s13, 1
      %p112 = por %p110, %p111
      %p113 = scmp.ne.s32.totalorder %s105, %s108
      %p114 = scmp.eq.s32.totalorder %s13, 0
      %p115 = por %p113, %p114
      %p116 = scmp.ne.s32.totalorder %s105, %s108
      %p117 = scmp.eq.s32.totalorder %s18, 1
      %p118 = por %p116, %p117
      %p119 = scmp.ne.s32.totalorder %s108, %s109
      %p120 = scmp.eq.s32.totalorder %s18, 0
      %p121 = por %p119, %p120
      %p122 = scmp.ne.s32.totalorder %s108, %s109
      %p123 = scmp.eq.s32.totalorder %s19, 1
      %p124 = por %p122, %p123
      %p126 = scmp.ne.s32.totalorder %s109, %s125
      %p127 = scmp.eq.s32.totalorder %s19, 0
      %p128 = por %p126, %p127
      %s129 = ssub.s32 %s20, %s32
      %s130 = ssub.s32 %s21, %s28
      %s131 = sor.u32 %s129, %s130
      %p132 = scmp.eq.s32.totalorder %s131, 0
      %s134 = sadd.s32 %s133, 1
      %s135 = scalar_select %p132, %s133, %s134
      %p138 = pneg %p132
      %p139 = scmp.eq.s32.totalorder %s13, 1
      %p140 = por %p138, %p139
      %p141 = scmp.ne.s32.totalorder %s133, %s136
      %p142 = scmp.eq.s32.totalorder %s13, 0
      %p143 = por %p141, %p142
      %p144 = scmp.ne.s32.totalorder %s133, %s136
      %p145 = scmp.eq.s32.totalorder %s18, 1
      %p146 = por %p144, %p145
      %p147 = scmp.ne.s32.totalorder %s136, %s137
      %p148 = scmp.eq.s32.totalorder %s18, 0
      %p149 = por %p147, %p148
      %p150 = scmp.ne.s32.totalorder %s136, %s137
      %p151 = scmp.eq.s32.totalorder %s19, 1
      %p152 = por %p150, %p151
      %p154 = scmp.ne.s32.totalorder %s137, %s153
      %p155 = scmp.eq.s32.totalorder %s19, 0
      %p156 = por %p154, %p155
      %p157 = scmp.le.s32.totalorder 1, %s13
      %p158 = scmp.lt.s32.totalorder %s13, 3
      %p159 = pnand %p157, %p158
      %p160 = pneg %p159
      // Predicated region
      $region9: #{tpu_custom_call.1} parent=5 // pred_check
        _
      $region10: #{tpu_custom_call.1} parent=5 // pred_check_branch
        %162 = sbr.rel (%p159) target = $region12
      $region11: #{tpu_custom_call.1} parent=5 // pred_region
        %s163 = ssub.s32 %s13, 1
        // Predicated region
        $region13: #{tpu_custom_call.1} parent=11 // pred_check
          %p164 = pneg %p72
        $region14: #{tpu_custom_call.1} parent=11 // pred_check_branch
          %166 = sbr.rel (%p164) target = $region16
        $region15: #{tpu_custom_call.1} parent=11 // pred_region
          _
        $region16: #{tpu_custom_call.1} parent=11 // pred_fallthru
          _
        // Predicated region
        $region17: #{tpu_custom_call.1} parent=11 // pred_check
          %p167 = pneg %p93
        $region18: #{tpu_custom_call.1} parent=11 // pred_check_branch
          %169 = sbr.rel (%p167) target = $region20
        $region19: #{tpu_custom_call.1} parent=11 // pred_region
          _
        $region20: #{tpu_custom_call.1} parent=11 // pred_fallthru
          _
      $region12: #{tpu_custom_call.1} parent=5 // pred_fallthru
        _
      %p170 = scmp.lt.s32.totalorder %s13, 2
      // Predicated region
      $region21: #{tpu_custom_call.1} parent=5 // pred_check
        %p171 = pneg %p170
      $region22: #{tpu_custom_call.1} parent=5 // pred_check_branch
        %173 = sbr.rel (%p171) target = $region24
      $region23: #{tpu_custom_call.1} parent=5 // pred_region
        // Predicated region
        $region25: #{tpu_custom_call.1} parent=23 // pred_check
          %p174 = pneg %p45
        $region26: #{tpu_custom_call.1} parent=23 // pred_check_branch
          %176 = sbr.rel (%p174) target = $region28
        $region27: #{tpu_custom_call.1} parent=23 // pred_region
          %p177 = scmp.lt.s32.totalorder %s20, 1
          %s178 = scalar_select %p177, %s20, 1
          %s179 = scalar_lea.vmem %s0, %s178
        $region28: #{tpu_custom_call.1} parent=23 // pred_fallthru
          _
        // Predicated region
        $region29: #{tpu_custom_call.1} parent=23 // pred_check
          %p180 = pneg %p115
        $region30: #{tpu_custom_call.1} parent=23 // pred_check_branch
          %182 = sbr.rel (%p180) target = $region32
        $region31: #{tpu_custom_call.1} parent=23 // pred_region
          %p183 = scmp.lt.s32.totalorder %s20, 1
          %s184 = scalar_select %p183, %s20, 1
          %p185 = scmp.lt.s32.totalorder %s21, 0
          %s186 = scalar_select %p185, %s21, 0
          %s187 = sadd.s32 %s186, %s184
          %s188 = smul.addr %s187, 2
          %s189 = scalar_lea.vmem %s3, %s188
        $region32: #{tpu_custom_call.1} parent=23 // pred_fallthru
          _
      $region24: #{tpu_custom_call.1} parent=5 // pred_fallthru
        _
      %p190 = scmp.le.s32.totalorder 1, %s13
      %p191 = scmp.lt.s32.totalorder %s13, 3
      %p192 = pnand %p190, %p191
      %p193 = pneg %p192
      // Predicated region
      $region33: #{tpu_custom_call.1} parent=5 // pred_check
        _
      $region34: #{tpu_custom_call.1} parent=5 // pred_check_branch
        %195 = sbr.rel (%p192) target = $region36
      $region35: #{tpu_custom_call.1} parent=5 // pred_region
        %s196 = ssub.s32 %s13, 1
        %p197 = scmp.lt.s32.totalorder %s22, 1
        %s198 = scalar_select %p197, %s22, 1
        %s199 = scalar_lea.vmem %s0, %s198
        %p200 = pneg %p51
        %p201 = pneg %p48
        %p202 = pneg %p72
        %p203 = pneg %p69
        %p204 = pneg %p93
        %p205 = pneg %p90
        %p206 = scmp.lt.s32.totalorder %s22, 1
        %s207 = scalar_select %p206, %s22, 1
        %p208 = scmp.lt.s32.totalorder %s23, 0
        %s209 = scalar_select %p208, %s23, 0
        %s210 = sadd.s32 %s209, %s207
        %s211 = smul.addr %s210, 2
        %s212 = scalar_lea.vmem %s3, %s211
        %p213 = pneg %p121
        %p214 = pneg %p118
        %p215 = pneg %p149
        %p216 = pneg %p146
        %s217 = sand.u32 %s136, 1
        %s218 = scalar_lea.sflag [#allocation3], %s217
        %s219 = sand.u32 %s136, 1
        %s220 = smul.addr %s219, 2
        %s221 = scalar_lea.vmem [#allocation2], %s220
        %p222 = scmp.lt.s32.totalorder %s22, 1
        %s223 = scalar_select %p222, %s22, 1
        %s224 = scalar_lea.vmem %s0, %s223
        %p225 = scmp.lt.s32.totalorder %s22, 1
        %s226 = scalar_select %p225, %s22, 1
        %p227 = scmp.lt.s32.totalorder %s23, 0
        %s228 = scalar_select %p227, %s23, 0
        %s229 = sadd.s32 %s228, %s226
        %s230 = smul.addr %s229, 2
        %s231 = scalar_lea.vmem %s3, %s230
        %v232 = vld [vmem:[%s224] sm:$0x1]
        %v233 = vxor.u32 %v232, 2147483648
        %v234 = vmul.f32 %v233, 1.442695
        %v235 = vpow.pop %v234
        %v236 = vadd.f32 %v235, 1.0
        %v237 = vrcp.pop %v236
        %v238 = vmul.f32 1.0, %v237
        %v239 = vmul.f32 %v232, %v238
        %v240 = vld [vmem:[%s1] sm:$0xff]
        %v241 = vld [vmem:[%s1 + $0x8] sm:$0xff]
        %v242 = vld [vmem:[%s1 + $0x10] sm:$0xff]
        %v243 = vld [vmem:[%s1 + $0x18] sm:$0xff]
        %v244 = vld [vmem:[%s2] sm:$0x1]
        %vm245 = vcmask 261120
        %v247 = vsel %vm245, %v239, 0
        %249 = vmatprep.subr.mxu0 0.0
        %250 = vmatpush1.msra.mxu0 0.0
        %251 = vmatprep.subr.mxu0 0.0
        %252 = vmatpush1.msra.mxu0 0.0
        %253 = vmatprep.subr.mxu0 0.0
        %254 = vmatpush1.msra.mxu0 0.0
        %255 = vmatprep.subr.mxu0 0.0
        %256 = vmatpush1.msra.mxu0 0.0
        %257 = vmatprep.subr.mxu0 0.0
        %258 = vmatpush1.msra.mxu0 0.0
        %259 = vmatprep.subr.mxu0 0.0
        %260 = vmatpush1.msra.mxu0 0.0
        %261 = vmatprep.subr.mxu0 0.0
        %262 = vmatpush1.msra.mxu0 0.0
        %263 = vmatprep.subr.mxu0 0.0
        %264 = vmatpush1.msra.mxu0 0.0
        %265 = vmatprep.subr.mxu0 0.0
        %266 = vmatpush1.msra.mxu0 0.0
        %267 = vmatprep.subr.mxu0 0.0
        %268 = vmatpush1.msra.mxu0 0.0
        %269 = vmatprep.subr.mxu0 0.0
        %270 = vmatpush1.msra.mxu0 0.0
        %271 = vmatprep.subr.mxu0 0.0
        %272 = vmatpush1.msra.mxu0 0.0
        %273 = vmatprep.subr.mxu0 0.0
        %274 = vmatpush1.msra.mxu0 %v243
        %275 = vmatprep.subr.mxu0 0.0
        %276 = vmatpush1.msra.mxu0 %v242
        %277 = vmatprep.subr.mxu0 0.0
        %278 = vmatpush1.msra.mxu0 %v241
        %279 = vmatprep.subr.mxu0 0.0
        %280 = vmatpush1.msra.mxu0 %v240
        %281 = vmatprep.subr.mxu0 0.0
        %282 = vmatpush2.msra.mxu0 0.0
        %283 = vmatprep.subr.mxu0 0.0
        %284 = vmatpush2.msra.mxu0 0.0
        %285 = vmatprep.subr.mxu0 0.0
        %286 = vmatpush2.msra.mxu0 0.0
        %287 = vmatprep.subr.mxu0 0.0
        %288 = vmatpush2.msra.mxu0 0.0
        %289 = vmatprep.subr.mxu0 0.0
        %290 = vmatpush2.msra.mxu0 0.0
        %291 = vmatprep.subr.mxu0 0.0
        %292 = vmatpush2.msra.mxu0 0.0
        %293 = vmatprep.subr.mxu0 0.0
        %294 = vmatpush2.msra.mxu0 0.0
        %295 = vmatprep.subr.mxu0 0.0
        %296 = vmatpush2.msra.mxu0 0.0
        %297 = vmatprep.subr.mxu0 0.0
        %298 = vmatpush2.msra.mxu0 0.0
        %299 = vmatprep.subr.mxu0 0.0
        %300 = vmatpush2.msra.mxu0 0.0
        %301 = vmatprep.subr.mxu0 0.0
        %302 = vmatpush2.msra.mxu0 0.0
        %303 = vmatprep.subr.mxu0 0.0
        %304 = vmatpush2.msra.mxu0 0.0
        %305 = vmatprep.subr.mxu0 0.0
        %306 = vmatpush2.msra.mxu0 0.0
        %307 = vmatprep.subr.mxu0 0.0
        %308 = vmatpush2.msra.mxu0 0.0
        %309 = vmatprep.subr.mxu0 0.0
        %310 = vmatpush2.msra.mxu0 0.0
        %311 = vmatprep.subr.mxu0 0.0
        %312 = vmatpush2.msra.mxu0 0.0
        %313 = vmatprep.mubr.f32.mxu0 0.0
        %314 = vmatmul.mubr.f32.gmra.mxu0 %v247
        %v315 = vpop.f32.mrf.mxu0
        %v316 = vadd.f32 %v244, %v315
        %v317 = vpop.f32.mrf.mxu0
        %318 = vdwg.mxu0
        %v319 = vadd.f32 %v316, 1.0
        %s320 = scalar_lea.vmem %s1, 32
        %v321 = vld [vmem:[%s320] sm:$0xff]
        %v322 = vld [vmem:[%s320 + $0x8] sm:$0xff]
        %v323 = vld [vmem:[%s320 + $0x10] sm:$0xff]
        %v324 = vld [vmem:[%s320 + $0x18] sm:$0xff]
        %s325 = scalar_lea.vmem %s2, 1
        %v326 = vld [vmem:[%s325] sm:$0x1]
        %327 = vmatprep.subr.mxu0 0.0
        %328 = vmatpush1.msra.mxu0 0.0
        %329 = vmatprep.subr.mxu0 0.0
        %330 = vmatpush1.msra.mxu0 0.0
        %331 = vmatprep.subr.mxu0 0.0
        %332 = vmatpush1.msra.mxu0 0.0
        %333 = vmatprep.subr.mxu0 0.0
        %334 = vmatpush1.msra.mxu0 0.0
        %335 = vmatprep.subr.mxu0 0.0
        %336 = vmatpush1.msra.mxu0 0.0
        %337 = vmatprep.subr.mxu0 0.0
        %338 = vmatpush1.msra.mxu0 0.0
        %339 = vmatprep.subr.mxu0 0.0
        %340 = vmatpush1.msra.mxu0 0.0
        %341 = vmatprep.subr.mxu0 0.0
        %342 = vmatpush1.msra.mxu0 0.0
        %343 = vmatprep.subr.mxu0 0.0
        %344 = vmatpush1.msra.mxu0 0.0
        %345 = vmatprep.subr.mxu0 0.0
        %346 = vmatpush1.msra.mxu0 0.0
        %347 = vmatprep.subr.mxu0 0.0
        %348 = vmatpush1.msra.mxu0 0.0
        %349 = vmatprep.subr.mxu0 0.0
        %350 = vmatpush1.msra.mxu0 0.0
        %351 = vmatprep.subr.mxu0 0.0
        %352 = vmatpush1.msra.mxu0 %v324
        %353 = vmatprep.subr.mxu0 0.0
        %354 = vmatpush1.msra.mxu0 %v323
        %355 = vmatprep.subr.mxu0 0.0
        %356 = vmatpush1.msra.mxu0 %v322
        %357 = vmatprep.subr.mxu0 0.0
        %358 = vmatpush1.msra.mxu0 %v321
        %359 = vmatprep.subr.mxu0 0.0
        %360 = vmatpush2.msra.mxu0 0.0
        %361 = vmatprep.subr.mxu0 0.0
        %362 = vmatpush2.msra.mxu0 0.0
        %363 = vmatprep.subr.mxu0 0.0
        %364 = vmatpush2.msra.mxu0 0.0
        %365 = vmatprep.subr.mxu0 0.0
        %366 = vmatpush2.msra.mxu0 0.0
        %367 = vmatprep.subr.mxu0 0.0
        %368 = vmatpush2.msra.mxu0 0.0
        %369 = vmatprep.subr.mxu0 0.0
        %370 = vmatpush2.msra.mxu0 0.0
        %371 = vmatprep.subr.mxu0 0.0
        %372 = vmatpush2.msra.mxu0 0.0
        %373 = vmatprep.subr.mxu0 0.0
        %374 = vmatpush2.msra.mxu0 0.0
        %375 = vmatprep.subr.mxu0 0.0
        %376 = vmatpush2.msra.mxu0 0.0
        %377 = vmatprep.subr.mxu0 0.0
        %378 = vmatpush2.msra.mxu0 0.0
        %379 = vmatprep.subr.mxu0 0.0
        %380 = vmatpush2.msra.mxu0 0.0
        %381 = vmatprep.subr.mxu0 0.0
        %382 = vmatpush2.msra.mxu0 0.0
        %383 = vmatprep.subr.mxu0 0.0
        %384 = vmatpush2.msra.mxu0 0.0
        %385 = vmatprep.subr.mxu0 0.0
        %386 = vmatpush2.msra.mxu0 0.0
        %387 = vmatprep.subr.mxu0 0.0
        %388 = vmatpush2.msra.mxu0 0.0
        %389 = vmatprep.subr.mxu0 0.0
        %390 = vmatpush2.msra.mxu0 0.0
        %391 = vmatprep.mubr.f32.mxu0 0.0
        %392 = vmatmul.mubr.f32.gmra.mxu0 %v247
        %v393 = vpop.f32.mrf.mxu0
        %v394 = vadd.f32 %v326, %v393
        %v395 = vpop.f32.mrf.mxu0
        %396 = vdwg.mxu0
        %398 = vrot.lane.b32.xlu0 %v319, 16
        %v399 = vpop.permute.xlu0 %398
        %401 = vrot.lane.b32.xlu0 %v319, 32
        %v402 = vpop.permute.xlu0 %401
        %404 = vrot.lane.b32.xlu0 %v319, 48
        %v405 = vpop.permute.xlu0 %404
        %407 = vrot.lane.b32.xlu0 %v319, 64
        %v408 = vpop.permute.xlu0 %407
        %410 = vrot.lane.b32.xlu0 %v319, 80
        %v411 = vpop.permute.xlu0 %410
        %413 = vrot.lane.b32.xlu0 %v319, 96
        %v414 = vpop.permute.xlu0 %413
        %416 = vrot.lane.b32.xlu0 %v319, 112
        %v417 = vpop.permute.xlu0 %416
        %vm419 = vcmask 130048
        %v420 = vsel %vm419, %v319, %v399
        %v421 = vsel %vm245, %v420, %v402
        %vm422 = vcmask 392192
        %v423 = vsel %vm422, %v421, %v405
        %vm424 = vcmask 523264
        %v425 = vsel %vm424, %v423, %v408
        %vm426 = vcmask 654336
        %v427 = vsel %vm426, %v425, %v411
        %vm428 = vcmask 785408
        %v429 = vsel %vm428, %v427, %v414
        %vm430 = vcmask 916480
        %v431 = vsel %vm430, %v429, %v417
        %433 = vrot.lane.b32.xlu0 %v394, 16
        %v434 = vpop.permute.xlu0 %433
        %436 = vrot.lane.b32.xlu0 %v394, 32
        %v437 = vpop.permute.xlu0 %436
        %439 = vrot.lane.b32.xlu0 %v394, 48
        %v440 = vpop.permute.xlu0 %439
        %442 = vrot.lane.b32.xlu0 %v394, 64
        %v443 = vpop.permute.xlu0 %442
        %445 = vrot.lane.b32.xlu0 %v394, 80
        %v446 = vpop.permute.xlu0 %445
        %448 = vrot.lane.b32.xlu0 %v394, 96
        %v449 = vpop.permute.xlu0 %448
        %451 = vrot.lane.b32.xlu0 %v394, 112
        %v452 = vpop.permute.xlu0 %451
        %v454 = vsel %vm419, %v394, %v434
        %v455 = vsel %vm245, %v454, %v437
        %v456 = vsel %vm422, %v455, %v440
        %v457 = vsel %vm424, %v456, %v443
        %v458 = vsel %vm426, %v457, %v446
        %v459 = vsel %vm428, %v458, %v449
        %v460 = vsel %vm430, %v459, %v452
        %v461 = vld [vmem:[%s231] sm:$0x3]
        %v462 = vlaneseq
        %v463 = vshrl.u32 %v462, 7
        %v464 = vsub.s32 0, %v463
        %v465 = vrot.slane %v431, %v464
        %v466 = vmul.f32 %v461, %v465
        %v467 = vlaneseq
        %v468 = vshrl.u32 %v467, 7
        %v469 = vsub.s32 0, %v468
        %v470 = vrot.slane %v460, %v469
        %v471 = vadd.f32 %v466, %v470
        %472 = vst [vmem:[%s221] sm:$0x3] %v471
        %s473 = sand.u32 %s136, 1
        %s474 = scalar_lea.sflag [#allocation3], %s473
        %s475 = sand.u32 %s136, 1
        %s476 = smul.addr %s475, 2
        %s477 = scalar_lea.vmem [#allocation2], %s476
        // Predicated region
        $region37: #{tpu_custom_call.1} parent=35 // pred_check
          %p478 = pneg %p146
        $region38: #{tpu_custom_call.1} parent=35 // pred_check_branch
          %480 = sbr.rel (%p478) target = $region40
        $region39: #{tpu_custom_call.1} parent=35 // pred_region
          %s482 = ssub.s32 32, 32
          %483 = vsyncadd %s474, %s482
          %s484 = sadd.s32 %s23, %s22
          %s485 = smul.addr %s484, 32
          %s486 = scalar_lea.hbm %s4, %s485
          %s488 = sshll.u32 %s477, 4
          %s489 = int_to_ptr.vmem [resolvable:$true] %s488
          %491 = dma.vmem_to_hbm [thread:$0]  %s489, 32, %s486, %s474
        $region40: #{tpu_custom_call.1} parent=35 // pred_fallthru
          _
      $region36: #{tpu_custom_call.1} parent=5 // pred_fallthru
        _
      %p492 = scmp.le.s32.totalorder 2, %s13
      // Predicated region
      $region41: #{tpu_custom_call.1} parent=5 // pred_check
        %p493 = pneg %p492
      $region42: #{tpu_custom_call.1} parent=5 // pred_check_branch
        %495 = sbr.rel (%p493) target = $region44
      $region43: #{tpu_custom_call.1} parent=5 // pred_region
        %s496 = ssub.s32 %s13, 2
        // Predicated region
        $region45: #{tpu_custom_call.1} parent=43 // pred_check
          %p497 = pneg %p152
        $region46: #{tpu_custom_call.1} parent=43 // pred_check_branch
          %499 = sbr.rel (%p497) target = $region48
        $region47: #{tpu_custom_call.1} parent=43 // pred_region
          %s500 = sand.u32 %s137, 1
          %s501 = scalar_lea.sflag [#allocation3], %s500
          %s502 = sand.u32 %s137, 1
          %s503 = smul.addr %s502, 2
          %s504 = scalar_lea.vmem [#allocation2], %s503
          %505 = dma.done %s501, 32
        $region48: #{tpu_custom_call.1} parent=43 // pred_fallthru
          _
      $region44: #{tpu_custom_call.1} parent=5 // pred_fallthru
        _
    $region6: #{tpu_custom_call.1} parent=1 // loop_footer
      %s17 = sadd.s32 1, %s13
    $region7: #{tpu_custom_call.1} parent=1 // loop_footer_branch
      %12 = sbr.rel target = $region3
    $region8: #{tpu_custom_call.1} parent=1 // loop_exit
      _
    %506 = vsyncpa [#allocation3], 1
    %s507 = scalar_lea.sflag [#allocation3], 1
    %508 = vsyncpa %s507, 1

</llo_original>
